<compile_context>
chip_gen: v7x
topology: tpu7x:2x2x1
jax: 0.10.0
libtpu: 0.0.40
codegen_flags: <defaults>
</compile_context>

<pallas_src>
import functools

import jax
import jax.numpy as jnp
from jax import lax
from jax.experimental import pallas as pl
from jax.experimental.pallas import tpu as pltpu


def _round_up(x, m):
    return ((x + m - 1) // m) * m


def _mcc_kernel(x_ref, o_ref, acc_ref, *, inv_t, n_valid, tile_n, n_class,
                mxu_dtype):
    """Streaming CCM accumulation + fused finalize (scalar loss via SMEM)."""
    i = pl.program_id(0)
    n_tiles = pl.num_programs(0)

    @pl.when(i == 0)
    def _init():
        acc_ref[...] = jnp.zeros_like(acc_ref)

    x = x_ref[...].astype(jnp.float32)                        # (tile_n, c_pad)

    # softmax(x / t, dim=1); constant divide folded into a multiply.
    z = x * inv_t
    z = z - jnp.max(z, axis=1, keepdims=True)
    e = jnp.exp(z)
    se = jnp.sum(e, axis=1, keepdims=True)                    # (tile_n, 1)
    p = e * pl.reciprocal(se, approx=True)                    # (tile_n, c_pad)

    # Entropy weight via logsumexp identity: log p = z - log(se), so
    #   H = -sum(p * log p) = log(se) - sum(p * z)   (1 vlog / sample on EUP).
    # detach() is a no-op for the forward value.  Padded classes: p == 0
    # exactly, so their p*z terms are exactly 0.
    ent = jnp.log(se) - jnp.sum(p * z, axis=1, keepdims=True)  # (tile_n, 1)
    w = 1.0 + jnp.exp(-ent)                                    # (tile_n, 1)
    pw = p * w

    if n_valid % tile_n != 0:
        # Only emitted when the batch is not tile-aligned: zero the
        # contribution of padded sample rows (row index >= n_valid).
        rid = i * tile_n + lax.broadcasted_iota(jnp.int32, (tile_n, 1), 0)
        pw = jnp.where(rid < n_valid, pw, 0.0)

    # (p * w)^T @ p on the MXU, contracting the sample axis of both operands
    # (no explicit transpose).  bf16 operands, f32 accumulation.  The
    # n*w/sum(w) normalisation is dropped: uniform CCM scale that cancels in
    # the row normalisation below.
    acc_ref[...] += lax.dot_general(
        pw.astype(mxu_dtype), p.astype(mxu_dtype),
        dimension_numbers=(((0,), (0,)), ((), ())),
        preferred_element_type=jnp.float32)

    @pl.when(i == n_tiles - 1)
    def _finalize():
        ccm = acc_ref[...]                                     # (c_pad, c_pad)
        # torch broadcast: C / C.sum(dim=1) divides element [i, j] by the
        # row-sum of row j.  Padded classes have an exactly-zero row; the
        # guard keeps their (zero) entries at 0 instead of 0 * inf.  This is
        # c_pad divides once per call -> negligible, kept exact.
        rowsum = jnp.sum(ccm, axis=1)                          # (c_pad,)
        inv_rowsum = 1.0 / jnp.maximum(rowsum, 1e-30)
        ccm = ccm * inv_rowsum                                 # scales column j

        c_pad = ccm.shape[0]
        rows = lax.broadcasted_iota(jnp.int32, (c_pad, c_pad), 0)
        cols = lax.broadcasted_iota(jnp.int32, (c_pad, c_pad), 1)
        trace = jnp.sum(jnp.where(rows == cols, ccm, 0.0))
        o_ref[0, 0] = (jnp.sum(ccm) - trace) * (1.0 / n_class)


def class_confusion_loss(output, t, *, max_tile_n=2048,
                         mxu_dtype=jnp.bfloat16,
                         vmem_budget_bytes=40 * 1024 * 1024):
    """Pallas implementation of ClassConfusionLoss(t)(output) for 2-D logits."""
    n, c = output.shape
    c_pad = _round_up(c, 128)                  # lane-aligned class axis
    itemsize = jnp.dtype(output.dtype).itemsize

    # Tile sizing: double-buffered (tile_n, c_pad) input + resident
    # (c_pad, c_pad) f32 accumulator must fit a budget that is safe on v7x
    # (64 MiB physical VMEM) and leaves ample headroom on v5e/v6e (128 MiB).
    acc_bytes = c_pad * c_pad * 4
    avail = max(vmem_budget_bytes - acc_bytes, 2 * 8 * c_pad * itemsize)
    tile_cap = max(8, (avail // (2 * c_pad * itemsize)) // 8 * 8)
    tile_n = max(8, min(max_tile_n, _round_up(n, 8), tile_cap))
    n_tiles = pl.cdiv(n, tile_n)
    n_pad = n_tiles * tile_n

    x = output
    if c_pad != c:
        # Large negative fill -> padded-class softmax probabilities are 0.
        x = jnp.pad(x, ((0, 0), (0, c_pad - c)), constant_values=-1e9)
    if n_pad != n:
        x = jnp.pad(x, ((0, n_pad - n), (0, 0)))

    # TODO(synk): t / n are baked as compile-time constants (one recompile per
    # distinct batch size); pass via scalar prefetch if n varies at runtime.
    kernel = functools.partial(
        _mcc_kernel, inv_t=1.0 / float(t), n_valid=n, tile_n=tile_n,
        n_class=c, mxu_dtype=mxu_dtype)

    vmem_needed = 2 * tile_n * c_pad * itemsize + acc_bytes
    vmem_limit = int(min(48 * 1024 * 1024,
                         max(32 * 1024 * 1024, vmem_needed + (4 << 20))))

    out = pl.pallas_call(
        kernel,
        out_shape=jax.ShapeDtypeStruct((1, 1), jnp.float32),
        grid=(n_tiles,),
        in_specs=[pl.BlockSpec((tile_n, c_pad), lambda i: (i, 0))],
        out_specs=pl.BlockSpec((1, 1), lambda i: (0, 0),
                               memory_space=pltpu.MemorySpace.SMEM),
        scratch_shapes=[pltpu.VMEM((c_pad, c_pad), jnp.float32)],
        compiler_params=pltpu.CompilerParams(
            dimension_semantics=("arbitrary",),
            vmem_limit_bytes=vmem_limit),
        cost_estimate=pl.CostEstimate(
            flops=2 * n_pad * c_pad * c_pad + 10 * n_pad * c_pad,
            transcendentals=n_pad * c_pad + 3 * n_pad,
            bytes_accessed=n_pad * c_pad * itemsize + 4),
    )(x)
    return out[0, 0]


def _reference_loss(output, t):
    # pure-JAX mirror of the PyTorch forward, for verification
    n, c = output.shape
    p = jax.nn.softmax(output.astype(jnp.float32) / t, axis=1)
    ent = -jnp.sum(p * jnp.log(p + 1e-5), axis=1)
    w = 1.0 + jnp.exp(-ent)
    w = ((n * w) / jnp.sum(w))[:, None]
    ccm = (p * w).T @ p
    ccm = ccm / jnp.sum(ccm, axis=1)
    return (jnp.sum(ccm) - jnp.trace(ccm)) / c


if __name__ == "__main__":
    key = jax.random.PRNGKey(0)
    n_sample, n_class = 8, 16
    t = 2.5
    logits = jax.random.normal(key, (n_sample, n_class), dtype=jnp.float32)

    ref = _reference_loss(logits, t)

    # Exact-precision path (f32 MXU operands): tracks the PyTorch forward
    # closely (only the logsumexp-entropy / approx-reciprocal drift remains).
    loss_f32 = jax.block_until_ready(
        class_confusion_loss(logits, t, mxu_dtype=jnp.float32))
    assert jnp.allclose(loss_f32, ref, rtol=5e-3, atol=1e-4), (loss_f32, ref)

    # Default fast path: bf16 MXU operands, f32 accumulation (~1e-3 drift).
    loss = jax.block_until_ready(class_confusion_loss(logits, t))
    assert jnp.allclose(loss, ref, rtol=2e-2, atol=1e-3), (loss, ref)

    print("KERNEL_OK")
</pallas_src>

<mosaic_0001>
module attributes {stable_mosaic.version = 11 : i64} {
  func.func @_mcc_kernel(%arg0: i32, %arg1: memref<8x128xf32, #tpu.memory_space<vmem>>, %arg2: memref<1x1xf32, #tpu.memory_space<smem>>, %arg3: memref<128x128xf32, #tpu.memory_space<vmem>>) attributes {dimension_semantics = [#tpu.dimension_semantics<arbitrary>], iteration_bounds = array<i64: 1>, scalar_prefetch = 0 : i64, scratch_operands = 1 : i64, tpu.core_type = #tpu.core_type<tc>, window_params = [{transform_indices = @transform_0, window_bounds = array<i64: 8, 128>}, {transform_indices = @transform_1, window_bounds = array<i64: 1, 1>}]} {
    %c0_i32 = arith.constant 0 : i32
    %0 = arith.cmpi eq, %arg0, %c0_i32 : i32
    %1 = arith.extui %0 : i1 to i32
    %c0_i32_0 = arith.constant 0 : i32
    %2 = arith.cmpi ne, %1, %c0_i32_0 : i32
    scf.if %2 {
      %cst_14 = arith.constant 0.000000e+00 : f32
      %35 = vector.broadcast %cst_14 : f32 to vector<128x128xf32>
      %c0_15 = arith.constant 0 : index
      %c0_16 = arith.constant 0 : index
      %36 = vector.load %arg3[%c0_15, %c0_16] : memref<128x128xf32, #tpu.memory_space<vmem>>, vector<128x128xf32>
      tpu.vector_store %arg3[%c0_15, %c0_16], %35 {strides = array<i32>} : memref<128x128xf32, #tpu.memory_space<vmem>>, vector<128x128xf32>,
    } else {
    }
    %c0 = arith.constant 0 : index
    %c0_1 = arith.constant 0 : index
    %3 = vector.load %arg1[%c0, %c0_1] : memref<8x128xf32, #tpu.memory_space<vmem>>, vector<8x128xf32>
    %cst = arith.constant 4.000000e-01 : f32
    %4 = vector.broadcast %cst : f32 to vector<8x128xf32>
    %5 = arith.mulf %3, %4 : vector<8x128xf32>
    %cst_2 = arith.constant dense<0xFF800000> : vector<8xf32>
    %6 = vector.multi_reduction <maximumf>, %5, %cst_2 [1] : vector<8x128xf32> to vector<8xf32>
    %7 = vector.shape_cast %6 : vector<8xf32> to vector<8x1xf32>
    %8 = vector.broadcast %7 : vector<8x1xf32> to vector<8x128xf32>
    %9 = arith.subf %5, %8 : vector<8x128xf32>
    %10 = math.exp %9 : vector<8x128xf32>
    %cst_3 = arith.constant dense<0.000000e+00> : vector<8xf32>
    %11 = vector.multi_reduction <add>, %10, %cst_3 [1] : vector<8x128xf32> to vector<8xf32>
    %12 = vector.shape_cast %11 : vector<8xf32> to vector<8x1xf32>
    %13 = tpu.reciprocal %12 {approx = true} : vector<8x1xf32> -> vector<8x1xf32>
    %14 = vector.broadcast %13 : vector<8x1xf32> to vector<8x128xf32>
    %15 = arith.mulf %10, %14 : vector<8x128xf32>
    %16 = math.log %12 : vector<8x1xf32>
    %17 = arith.mulf %15, %9 : vector<8x128xf32>
    %cst_4 = arith.constant dense<0.000000e+00> : vector<8xf32>
    %18 = vector.multi_reduction <add>, %17, %cst_4 [1] : vector<8x128xf32> to vector<8xf32>
    %19 = vector.shape_cast %18 : vector<8xf32> to vector<8x1xf32>
    %20 = arith.subf %16, %19 : vector<8x1xf32>
    %cst_5 = arith.constant 0.000000e+00 : f32
    %21 = vector.broadcast %cst_5 : f32 to vector<8x1xf32>
    %22 = arith.subf %21, %20 : vector<8x1xf32>
    %23 = math.exp %22 : vector<8x1xf32>
    %cst_6 = arith.constant 1.000000e+00 : f32
    %24 = vector.broadcast %cst_6 : f32 to vector<8x1xf32>
    %25 = arith.addf %24, %23 : vector<8x1xf32>
    %26 = vector.broadcast %25 : vector<8x1xf32> to vector<8x128xf32>
    %27 = arith.mulf %15, %26 : vector<8x128xf32>
    %c0_7 = arith.constant 0 : index
    %c0_8 = arith.constant 0 : index
    %28 = vector.load %arg3[%c0_7, %c0_8] : memref<128x128xf32, #tpu.memory_space<vmem>>, vector<128x128xf32>
    %cst_9 = arith.constant dense<0.000000e+00> : vector<128x128xf32>
    %29 = tpu.matmul %27, %15, %cst_9 {dimension_numbers = #tpu.dot_dimension_numbers<[0], [0], [1], [1], [0, 1, 1, 1], [], []>} : vector<8x128xf32>, vector<8x128xf32>, vector<128x128xf32> -> vector<128x128xf32>
    %30 = arith.addf %28, %29 : vector<128x128xf32>
    %c0_10 = arith.constant 0 : index
    %c0_11 = arith.constant 0 : index
    %31 = vector.load %arg3[%c0_10, %c0_11] : memref<128x128xf32, #tpu.memory_space<vmem>>, vector<128x128xf32>
    tpu.vector_store %arg3[%c0_10, %c0_11], %30 {strides = array<i32>} : memref<128x128xf32, #tpu.memory_space<vmem>>, vector<128x128xf32>,
    %c0_i32_12 = arith.constant 0 : i32
    %32 = arith.cmpi eq, %arg0, %c0_i32_12 : i32
    %33 = arith.extui %32 : i1 to i32
    %c0_i32_13 = arith.constant 0 : i32
    %34 = arith.cmpi ne, %33, %c0_i32_13 : i32
    scf.if %34 {
      %c0_14 = arith.constant 0 : index
      %c0_15 = arith.constant 0 : index
      %35 = vector.load %arg3[%c0_14, %c0_15] : memref<128x128xf32, #tpu.memory_space<vmem>>, vector<128x128xf32>
      %cst_16 = arith.constant dense<0.000000e+00> : vector<128xf32>
      %36 = vector.multi_reduction <add>, %35, %cst_16 [1] : vector<128x128xf32> to vector<128xf32>
      %cst_17 = arith.constant 1.000000e-30 : f32
      %37 = vector.broadcast %cst_17 : f32 to vector<128xf32>
      %38 = arith.maximumf %36, %37 : vector<128xf32>
      %cst_18 = arith.constant 1.000000e+00 : f32
      %39 = vector.broadcast %cst_18 : f32 to vector<128xf32>
      %40 = arith.divf %39, %38 : vector<128xf32>
      %41 = vector.shape_cast %40 : vector<128xf32> to vector<1x128xf32>
      %42 = vector.broadcast %41 : vector<1x128xf32> to vector<128x128xf32>
      %43 = arith.mulf %35, %42 : vector<128x128xf32>
      %44 = tpu.iota {dimensions = array<i32: 0>} : vector<128x128xi32>
      %45 = tpu.iota {dimensions = array<i32: 1>} : vector<128x128xi32>
      %46 = arith.cmpi eq, %44, %45 : vector<128x128xi32>
      %cst_19 = arith.constant 0.000000e+00 : f32
      %47 = vector.broadcast %cst_19 : f32 to vector<128x128xf32>
      %48 = arith.select %46, %43, %47 : vector<128x128xi1>, vector<128x128xf32>
      %49 = vector.shape_cast %48 : vector<128x128xf32> to vector<1x128x128xf32>
      %cst_20 = arith.constant dense<0.000000e+00> : vector<1xf32>
      %50 = vector.multi_reduction <add>, %49, %cst_20 [1, 2] : vector<1x128x128xf32> to vector<1xf32>
      %51 = vector.shape_cast %50 : vector<1xf32> to vector<1x1x1xf32>
      %52 = vector.extract %51[0, 0, 0] : f32 from vector<1x1x1xf32>
      %53 = vector.shape_cast %43 : vector<128x128xf32> to vector<1x128x128xf32>
      %cst_21 = arith.constant dense<0.000000e+00> : vector<1xf32>
      %54 = vector.multi_reduction <add>, %53, %cst_21 [1, 2] : vector<1x128x128xf32> to vector<1xf32>
      %55 = vector.shape_cast %54 : vector<1xf32> to vector<1x1x1xf32>
      %56 = vector.extract %55[0, 0, 0] : f32 from vector<1x1x1xf32>
      %57 = arith.subf %56, %52 : f32
      %cst_22 = arith.constant 6.250000e-02 : f32
      %58 = arith.mulf %57, %cst_22 : f32
      %c0_23 = arith.constant 0 : index
      %c0_24 = arith.constant 0 : index
      %59 = memref.load %arg2[%c0_23, %c0_24] : memref<1x1xf32, #tpu.memory_space<smem>>
      memref.store %58, %arg2[%c0_23, %c0_24] : memref<1x1xf32, #tpu.memory_space<smem>>
    } else {
    }
    return
  }
  func.func @transform_0(%arg0: i32) -> (i32, i32) {
    %c0_i32 = arith.constant 0 : i32
    %c0_i32_0 = arith.constant 0 : i32
    return %arg0, %c0_i32 : i32, i32
  }
  func.func @transform_1(%arg0: i32) -> (i32, i32) {
    %c0_i32 = arith.constant 0 : i32
    %c0_i32_0 = arith.constant 0 : i32
    %c0_i32_1 = arith.constant 0 : i32
    return %c0_i32, %c0_i32_0 : i32, i32
  }
}

</mosaic_0001>

<llo_original>
// kernel: tpu_custom_call.1
$region0: #{tpu_custom_call.1}
  #allocation0 [shape = 'u32[]', space=smem, size = 0x4, offset = 0x4, fixed_abs, tag = 'smem constant byte address 0x4 - core index']
  #allocation1 [shape = 'u32[144,128]{1,0:T(1,128)}', space=vmem, size = 0x12000, scoped, tag = 'internal scratch']
  #allocation2 [shape = 'f32[128,128]{1,0:T(8,128)}', space=vmem, size = 0x10000, scoped, tag = 'scratch operand']
  %s0 = inlined_call_operand.hbm [shape: f32[8,128], index: 0, kind: input, shape index: {}]
  %s1 = inlined_call_operand.hbm [shape: f32[1,1], index: 1, kind: output, shape index: {}]
  %s2 = sld [smem:[#allocation0]]
  $region26: #{tpu_custom_call.1} parent=0
    _
  %s4 = ssub.s32 1, %s2
  %s5 = scalar_select 0, %s4, %s2
  $region1: #{tpu_custom_call.1} parent=0
    #allocation3 [shape = 'u8[4096]{0}', space=vmem, size = 0x1000, scoped, tag = 'input window, operand 0, single buffered']
    #allocation4 [shape = 's32[1]{0}', space=sflag, size = 0x4, scoped, tag = 'scoped memory for tpu_custom_call.1']
    #allocation5 [shape = 's32[1]{0}', space=sflag, size = 0x4, scoped, tag = 'scoped memory for tpu_custom_call.1']
    #allocation6 [shape = 'u8[512]{0}', space=smem, size = 0x200, scoped, tag = 'output window, operand 0, single buffered']
    %6 = vsyncpa [#allocation4], 0
    %7 = vsyncpa [#allocation5], 0
    // Predicated region
    $region2: #{tpu_custom_call.1} parent=1 // pred_check
      _
    $region3: #{tpu_custom_call.1} parent=1 // pred_check_branch
      %9 = sbr.rel (0) target = $region5
    $region4: #{tpu_custom_call.1} parent=1 // pred_region
      %s11 = ssub.s32 128, 128
      %12 = vsyncadd [#allocation4], %s11
      %s14 = sshll.u32 [#allocation3], 4
      %s15 = int_to_ptr.vmem [resolvable:$true] %s14
      %17 = dma.hbm_to_vmem [thread:$0]  %s0, 128, %s15, [#allocation4]
    $region5: #{tpu_custom_call.1} parent=1 // pred_fallthru
      _
    // Predicated region
    $region6: #{tpu_custom_call.1} parent=1 // pred_check
      _
    $region7: #{tpu_custom_call.1} parent=1 // pred_check_branch
      %19 = sbr.rel (0) target = $region9
    $region8: #{tpu_custom_call.1} parent=1 // pred_region
      %20 = dma.done [#allocation4], 128
    $region9: #{tpu_custom_call.1} parent=1 // pred_fallthru
      _
    %p21 = scmp.eq.s32.totalorder 0, 0
    // Predicated region
    $region10: #{tpu_custom_call.1} parent=1 // pred_check
      %p22 = pneg %p21
    $region11: #{tpu_custom_call.1} parent=1 // pred_check_branch
      %24 = sbr.rel (%p22) target = $region13
    $region12: #{tpu_custom_call.1} parent=1 // pred_region
      %25 = vst [vmem:[#allocation2] sm:$0xff] 0.0
      %26 = vst [vmem:[#allocation2 + $0x8] sm:$0xff] 0.0
      %27 = vst [vmem:[#allocation2 + $0x10] sm:$0xff] 0.0
      %28 = vst [vmem:[#allocation2 + $0x18] sm:$0xff] 0.0
      %29 = vst [vmem:[#allocation2 + $0x20] sm:$0xff] 0.0
      %30 = vst [vmem:[#allocation2 + $0x28] sm:$0xff] 0.0
      %31 = vst [vmem:[#allocation2 + $0x30] sm:$0xff] 0.0
      %32 = vst [vmem:[#allocation2 + $0x38] sm:$0xff] 0.0
      %33 = vst [vmem:[#allocation2 + $0x40] sm:$0xff] 0.0
      %34 = vst [vmem:[#allocation2 + $0x48] sm:$0xff] 0.0
      %35 = vst [vmem:[#allocation2 + $0x50] sm:$0xff] 0.0
      %36 = vst [vmem:[#allocation2 + $0x58] sm:$0xff] 0.0
      %37 = vst [vmem:[#allocation2 + $0x60] sm:$0xff] 0.0
      %38 = vst [vmem:[#allocation2 + $0x68] sm:$0xff] 0.0
      %39 = vst [vmem:[#allocation2 + $0x70] sm:$0xff] 0.0
      %40 = vst [vmem:[#allocation2 + $0x78] sm:$0xff] 0.0
    $region13: #{tpu_custom_call.1} parent=1 // pred_fallthru
      _
    %v41 = vld [vmem:[#allocation3] sm:$0xff]
    %v42 = vmul.f32 %v41, 0.4
    %43 = vmax.xlane.f32.xlu0 %v42
    %v44 = vpop.xlane.xlu0 %43
    %v45 = vsub.f32 %v42, %v44
    %v46 = vmul.f32 %v45, 1.442695
    %v47 = vpow.pop %v46
    %48 = vadd.xlane.f32.xlu0 %v47
    %v49 = vpop.xlane.xlu0 %48
    %v50 = vrcp.pop %v49
    %v51 = vmul.f32 %v47, %v50
    %v52 = vlog2.pop %v49
    %v53 = vmul.f32 %v52, 0.6931472
    %v54 = vmul.f32 %v51, %v45
    %55 = vadd.xlane.f32.xlu0 %v54
    %v56 = vpop.xlane.xlu0 %55
    %v57 = vsub.f32 %v53, %v56
    %v58 = vsub.f32 0.0, %v57
    %v59 = vmul.f32 %v58, 1.442695
    %v60 = vpow.pop %v59
    %v61 = vadd.f32 %v60, 1.0
    %v62 = vmul.f32 %v51, %v61
    %v63 = vld [vmem:[#allocation2] sm:$0xff]
    %v64 = vld [vmem:[#allocation2 + $0x8] sm:$0xff]
    %v65 = vld [vmem:[#allocation2 + $0x10] sm:$0xff]
    %v66 = vld [vmem:[#allocation2 + $0x18] sm:$0xff]
    %v67 = vld [vmem:[#allocation2 + $0x20] sm:$0xff]
    %v68 = vld [vmem:[#allocation2 + $0x28] sm:$0xff]
    %v69 = vld [vmem:[#allocation2 + $0x30] sm:$0xff]
    %v70 = vld [vmem:[#allocation2 + $0x38] sm:$0xff]
    %v71 = vld [vmem:[#allocation2 + $0x40] sm:$0xff]
    %v72 = vld [vmem:[#allocation2 + $0x48] sm:$0xff]
    %v73 = vld [vmem:[#allocation2 + $0x50] sm:$0xff]
    %v74 = vld [vmem:[#allocation2 + $0x58] sm:$0xff]
    %v75 = vld [vmem:[#allocation2 + $0x60] sm:$0xff]
    %v76 = vld [vmem:[#allocation2 + $0x68] sm:$0xff]
    %v77 = vld [vmem:[#allocation2 + $0x70] sm:$0xff]
    %v78 = vld [vmem:[#allocation2 + $0x78] sm:$0xff]
    %79 = vxpose.xlu0.b32.start [1/16] %v62, 128
    %80 = vxpose.xlu0.b32.cont [2/16] 0.0, 128
    %81 = vxpose.xlu0.b32.cont [3/16] 0.0, 128
    %82 = vxpose.xlu0.b32.cont [4/16] 0.0, 128
    %83 = vxpose.xlu0.b32.cont [5/16] 0.0, 128
    %84 = vxpose.xlu0.b32.cont [6/16] 0.0, 128
    %85 = vxpose.xlu0.b32.cont [7/16] 0.0, 128
    %86 = vxpose.xlu0.b32.cont [8/16] 0.0, 128
    %87 = vxpose.xlu0.b32.cont [9/16] 0.0, 128
    %88 = vxpose.xlu0.b32.cont [10/16] 0.0, 128
    %89 = vxpose.xlu0.b32.cont [11/16] 0.0, 128
    %90 = vxpose.xlu0.b32.cont [12/16] 0.0, 128
    %91 = vxpose.xlu0.b32.cont [13/16] 0.0, 128
    %92 = vxpose.xlu0.b32.cont [14/16] 0.0, 128
    %93 = vxpose.xlu0.b32.cont [15/16] 0.0, 128
    %94 = vxpose.xlu0.b32.end [16/16] 0.0, 128
    %v95 = vpop.trf.xlu0
    %v96 = vpop.trf.xlu0
    %v97 = vpop.trf.xlu0
    %v98 = vpop.trf.xlu0
    %v99 = vpop.trf.xlu0
    %v100 = vpop.trf.xlu0
    %v101 = vpop.trf.xlu0
    %v102 = vpop.trf.xlu0
    %v103 = vpop.trf.xlu0
    %v104 = vpop.trf.xlu0
    %v105 = vpop.trf.xlu0
    %v106 = vpop.trf.xlu0
    %v107 = vpop.trf.xlu0
    %v108 = vpop.trf.xlu0
    %v109 = vpop.trf.xlu0
    %v110 = vpop.trf.xlu0
    %vm111 = vcmask 64512
    %v113 = vsel %vm111, %v95, 0
    %v116 = vsel %vm111, %v96, 0
    %v119 = vsel %vm111, %v97, 0
    %v122 = vsel %vm111, %v98, 0
    %v125 = vsel %vm111, %v99, 0
    %v128 = vsel %vm111, %v100, 0
    %v131 = vsel %vm111, %v101, 0
    %v134 = vsel %vm111, %v102, 0
    %v137 = vsel %vm111, %v103, 0
    %v140 = vsel %vm111, %v104, 0
    %v143 = vsel %vm111, %v105, 0
    %v146 = vsel %vm111, %v106, 0
    %v149 = vsel %vm111, %v107, 0
    %v152 = vsel %vm111, %v108, 0
    %v155 = vsel %vm111, %v109, 0
    %v158 = vsel %vm111, %v110, 0
    %160 = vmatprep.subr.mxu0 0.0
    %161 = vmatpush1.msra.mxu0 %v51
    %162 = vmatprep.subr.mxu0 0.0
    %163 = vmatpush1.msra.mxu0 0.0
    %164 = vmatprep.subr.mxu0 0.0
    %165 = vmatpush1.msra.mxu0 0.0
    %166 = vmatprep.subr.mxu0 0.0
    %167 = vmatpush1.msra.mxu0 0.0
    %168 = vmatprep.subr.mxu0 0.0
    %169 = vmatpush1.msra.mxu0 0.0
    %170 = vmatprep.subr.mxu0 0.0
    %171 = vmatpush1.msra.mxu0 0.0
    %172 = vmatprep.subr.mxu0 0.0
    %173 = vmatpush1.msra.mxu0 0.0
    %174 = vmatprep.subr.mxu0 0.0
    %175 = vmatpush1.msra.mxu0 0.0
    %176 = vmatprep.subr.mxu0 0.0
    %177 = vmatpush1.msra.mxu0 0.0
    %178 = vmatprep.subr.mxu0 0.0
    %179 = vmatpush1.msra.mxu0 0.0
    %180 = vmatprep.subr.mxu0 0.0
    %181 = vmatpush1.msra.mxu0 0.0
    %182 = vmatprep.subr.mxu0 0.0
    %183 = vmatpush1.msra.mxu0 0.0
    %184 = vmatprep.subr.mxu0 0.0
    %185 = vmatpush1.msra.mxu0 0.0
    %186 = vmatprep.subr.mxu0 0.0
    %187 = vmatpush1.msra.mxu0 0.0
    %188 = vmatprep.subr.mxu0 0.0
    %189 = vmatpush1.msra.mxu0 0.0
    %190 = vmatprep.subr.mxu0 0.0
    %191 = vmatpush1.msra.mxu0 0.0
    %192 = vmatprep.subr.mxu0 0.0
    %193 = vmatpush1.msra.mxu0 0.0
    %194 = vmatprep.subr.mxu0 0.0
    %195 = vmatpush1.msra.mxu0 0.0
    %196 = vmatprep.subr.mxu0 0.0
    %197 = vmatpush1.msra.mxu0 0.0
    %198 = vmatprep.subr.mxu0 0.0
    %199 = vmatpush1.msra.mxu0 0.0
    %200 = vmatprep.subr.mxu0 0.0
    %201 = vmatpush1.msra.mxu0 0.0
    %202 = vmatprep.subr.mxu0 0.0
    %203 = vmatpush1.msra.mxu0 0.0
    %204 = vmatprep.subr.mxu0 0.0
    %205 = vmatpush1.msra.mxu0 0.0
    %206 = vmatprep.subr.mxu0 0.0
    %207 = vmatpush1.msra.mxu0 0.0
    %208 = vmatprep.subr.mxu0 0.0
    %209 = vmatpush1.msra.mxu0 0.0
    %210 = vmatprep.subr.mxu0 0.0
    %211 = vmatpush1.msra.mxu0 0.0
    %212 = vmatprep.subr.mxu0 0.0
    %213 = vmatpush1.msra.mxu0 0.0
    %214 = vmatprep.subr.mxu0 0.0
    %215 = vmatpush1.msra.mxu0 0.0
    %216 = vmatprep.subr.mxu0 0.0
    %217 = vmatpush1.msra.mxu0 0.0
    %218 = vmatprep.subr.mxu0 0.0
    %219 = vmatpush1.msra.mxu0 0.0
    %220 = vmatprep.subr.mxu0 0.0
    %221 = vmatpush1.msra.mxu0 0.0
    %222 = vmatprep.subr.mxu0 0.0
    %223 = vmatpush1.msra.mxu0 0.0
    %224 = vmatprep.mubr.f32.mxu0 0.0
    %225 = vmatmul.mubr.f32.gmra.mrb[0].mxu0 %v113
    %v226 = vpop.f32.mrb[0].mxu0
    %v227 = vadd.f32 0.0, %v226
    %v228 = vpop.f32.mrb[0].mxu0
    %229 = vmatprep.mubr.f32.mxu0 0.0
    %230 = vmatmul.mubr.f32.gmra.mrb[0].mxu0 %v116
    %v231 = vpop.f32.mrb[0].mxu0
    %v232 = vadd.f32 0.0, %v231
    %v233 = vpop.f32.mrb[0].mxu0
    %234 = vmatprep.mubr.f32.mxu0 0.0
    %235 = vmatmul.mubr.f32.gmra.mrb[0].mxu0 %v119
    %v236 = vpop.f32.mrb[0].mxu0
    %v237 = vadd.f32 0.0, %v236
    %v238 = vpop.f32.mrb[0].mxu0
    %239 = vmatprep.mubr.f32.mxu0 0.0
    %240 = vmatmul.mubr.f32.gmra.mrb[0].mxu0 %v122
    %v241 = vpop.f32.mrb[0].mxu0
    %v242 = vadd.f32 0.0, %v241
    %v243 = vpop.f32.mrb[0].mxu0
    %244 = vmatprep.mubr.f32.mxu0 0.0
    %245 = vmatmul.mubr.f32.gmra.mrb[0].mxu0 %v125
    %v246 = vpop.f32.mrb[0].mxu0
    %v247 = vadd.f32 0.0, %v246
    %v248 = vpop.f32.mrb[0].mxu0
    %249 = vmatprep.mubr.f32.mxu0 0.0
    %250 = vmatmul.mubr.f32.gmra.mrb[0].mxu0 %v128
    %v251 = vpop.f32.mrb[0].mxu0
    %v252 = vadd.f32 0.0, %v251
    %v253 = vpop.f32.mrb[0].mxu0
    %254 = vmatprep.mubr.f32.mxu0 0.0
    %255 = vmatmul.mubr.f32.gmra.mrb[0].mxu0 %v131
    %v256 = vpop.f32.mrb[0].mxu0
    %v257 = vadd.f32 0.0, %v256
    %v258 = vpop.f32.mrb[0].mxu0
    %259 = vmatprep.mubr.f32.mxu0 0.0
    %260 = vmatmul.mubr.f32.gmra.mrb[0].mxu0 %v134
    %v261 = vpop.f32.mrb[0].mxu0
    %v262 = vadd.f32 0.0, %v261
    %v263 = vpop.f32.mrb[0].mxu0
    %264 = vmatprep.mubr.f32.mxu0 0.0
    %265 = vmatmul.mubr.f32.gmra.mrb[0].mxu0 %v137
    %v266 = vpop.f32.mrb[0].mxu0
    %v267 = vadd.f32 0.0, %v266
    %v268 = vpop.f32.mrb[0].mxu0
    %269 = vmatprep.mubr.f32.mxu0 0.0
    %270 = vmatmul.mubr.f32.gmra.mrb[0].mxu0 %v140
    %v271 = vpop.f32.mrb[0].mxu0
    %v272 = vadd.f32 0.0, %v271
    %v273 = vpop.f32.mrb[0].mxu0
    %274 = vmatprep.mubr.f32.mxu0 0.0
    %275 = vmatmul.mubr.f32.gmra.mrb[0].mxu0 %v143
    %v276 = vpop.f32.mrb[0].mxu0
    %v277 = vadd.f32 0.0, %v276
    %v278 = vpop.f32.mrb[0].mxu0
    %279 = vmatprep.mubr.f32.mxu0 0.0
    %280 = vmatmul.mubr.f32.gmra.mrb[0].mxu0 %v146
    %v281 = vpop.f32.mrb[0].mxu0
    %v282 = vadd.f32 0.0, %v281
    %v283 = vpop.f32.mrb[0].mxu0
    %284 = vmatprep.mubr.f32.mxu0 0.0
    %285 = vmatmul.mubr.f32.gmra.mrb[0].mxu0 %v149
    %v286 = vpop.f32.mrb[0].mxu0
    %v287 = vadd.f32 0.0, %v286
    %v288 = vpop.f32.mrb[0].mxu0
    %289 = vmatprep.mubr.f32.mxu0 0.0
    %290 = vmatmul.mubr.f32.gmra.mrb[0].mxu0 %v152
    %v291 = vpop.f32.mrb[0].mxu0
    %v292 = vadd.f32 0.0, %v291
    %v293 = vpop.f32.mrb[0].mxu0
    %294 = vmatprep.mubr.f32.mxu0 0.0
    %295 = vmatmul.mubr.f32.gmra.mrb[0].mxu0 %v155
    %v296 = vpop.f32.mrb[0].mxu0
    %v297 = vadd.f32 0.0, %v296
    %v298 = vpop.f32.mrb[0].mxu0
    %299 = vmatprep.mubr.f32.mxu0 0.0
    %300 = vmatmul.mubr.f32.gmra.mrb[0].mxu0 %v158
    %v301 = vpop.f32.mrb[0].mxu0
    %v302 = vadd.f32 0.0, %v301
    %v303 = vpop.f32.mrb[0].mxu0
    %304 = vdwg.mxu0
    %v305 = vadd.f32 %v63, %v227
    %v306 = vadd.f32 %v64, %v232
    %v307 = vadd.f32 %v65, %v237
    %v308 = vadd.f32 %v66, %v242
    %v309 = vadd.f32 %v67, %v247
    %v310 = vadd.f32 %v68, %v252
    %v311 = vadd.f32 %v69, %v257
    %v312 = vadd.f32 %v70, %v262
    %v313 = vadd.f32 %v71, %v267
    %v314 = vadd.f32 %v72, %v272
    %v315 = vadd.f32 %v73, %v277
    %v316 = vadd.f32 %v74, %v282
    %v317 = vadd.f32 %v75, %v287
    %v318 = vadd.f32 %v76, %v292
    %v319 = vadd.f32 %v77, %v297
    %v320 = vadd.f32 %v78, %v302
    %321 = vst [vmem:[#allocation2] sm:$0xff] %v305
    %322 = vst [vmem:[#allocation2 + $0x8] sm:$0xff] %v306
    %323 = vst [vmem:[#allocation2 + $0x10] sm:$0xff] %v307
    %324 = vst [vmem:[#allocation2 + $0x18] sm:$0xff] %v308
    %325 = vst [vmem:[#allocation2 + $0x20] sm:$0xff] %v309
    %326 = vst [vmem:[#allocation2 + $0x28] sm:$0xff] %v310
    %327 = vst [vmem:[#allocation2 + $0x30] sm:$0xff] %v311
    %328 = vst [vmem:[#allocation2 + $0x38] sm:$0xff] %v312
    %329 = vst [vmem:[#allocation2 + $0x40] sm:$0xff] %v313
    %330 = vst [vmem:[#allocation2 + $0x48] sm:$0xff] %v314
    %331 = vst [vmem:[#allocation2 + $0x50] sm:$0xff] %v315
    %332 = vst [vmem:[#allocation2 + $0x58] sm:$0xff] %v316
    %333 = vst [vmem:[#allocation2 + $0x60] sm:$0xff] %v317
    %334 = vst [vmem:[#allocation2 + $0x68] sm:$0xff] %v318
    %335 = vst [vmem:[#allocation2 + $0x70] sm:$0xff] %v319
    %336 = vst [vmem:[#allocation2 + $0x78] sm:$0xff] %v320
    // Predicated region
    $region14: #{tpu_custom_call.1} parent=1 // pred_check
      %p337 = pneg %p21
    $region15: #{tpu_custom_call.1} parent=1 // pred_check_branch
      %339 = sbr.rel (%p337) target = $region17
    $region16: #{tpu_custom_call.1} parent=1 // pred_region
      %v340 = vld [vmem:[#allocation2] sm:$0xff]
      %v341 = vld [vmem:[#allocation2 + $0x8] sm:$0xff]
      %v342 = vld [vmem:[#allocation2 + $0x10] sm:$0xff]
      %v343 = vld [vmem:[#allocation2 + $0x18] sm:$0xff]
      %v344 = vld [vmem:[#allocation2 + $0x20] sm:$0xff]
      %v345 = vld [vmem:[#allocation2 + $0x28] sm:$0xff]
      %v346 = vld [vmem:[#allocation2 + $0x30] sm:$0xff]
      %v347 = vld [vmem:[#allocation2 + $0x38] sm:$0xff]
      %v348 = vld [vmem:[#allocation2 + $0x40] sm:$0xff]
      %v349 = vld [vmem:[#allocation2 + $0x48] sm:$0xff]
      %v350 = vld [vmem:[#allocation2 + $0x50] sm:$0xff]
      %v351 = vld [vmem:[#allocation2 + $0x58] sm:$0xff]
      %v352 = vld [vmem:[#allocation2 + $0x60] sm:$0xff]
      %v353 = vld [vmem:[#allocation2 + $0x68] sm:$0xff]
      %v354 = vld [vmem:[#allocation2 + $0x70] sm:$0xff]
      %v355 = vld [vmem:[#allocation2 + $0x78] sm:$0xff]
      %356 = vadd.xlane.f32.xlu0 %v340
      %v357 = vpop.xlane.xlu0 %356
      %358 = vadd.xlane.f32.xlu0 %v341
      %v359 = vpop.xlane.xlu0 %358
      %360 = vadd.xlane.f32.xlu0 %v342
      %v361 = vpop.xlane.xlu0 %360
      %362 = vadd.xlane.f32.xlu0 %v343
      %v363 = vpop.xlane.xlu0 %362
      %364 = vadd.xlane.f32.xlu0 %v344
      %v365 = vpop.xlane.xlu0 %364
      %366 = vadd.xlane.f32.xlu0 %v345
      %v367 = vpop.xlane.xlu0 %366
      %368 = vadd.xlane.f32.xlu0 %v346
      %v369 = vpop.xlane.xlu0 %368
      %370 = vadd.xlane.f32.xlu0 %v347
      %v371 = vpop.xlane.xlu0 %370
      %372 = vadd.xlane.f32.xlu0 %v348
      %v373 = vpop.xlane.xlu0 %372
      %374 = vadd.xlane.f32.xlu0 %v349
      %v375 = vpop.xlane.xlu0 %374
      %376 = vadd.xlane.f32.xlu0 %v350
      %v377 = vpop.xlane.xlu0 %376
      %378 = vadd.xlane.f32.xlu0 %v351
      %v379 = vpop.xlane.xlu0 %378
      %380 = vadd.xlane.f32.xlu0 %v352
      %v381 = vpop.xlane.xlu0 %380
      %382 = vadd.xlane.f32.xlu0 %v353
      %v383 = vpop.xlane.xlu0 %382
      %384 = vadd.xlane.f32.xlu0 %v354
      %v385 = vpop.xlane.xlu0 %384
      %386 = vadd.xlane.f32.xlu0 %v355
      %v387 = vpop.xlane.xlu0 %386
      %v388 = vmax.f32 %v357, 1e-30
      %v389 = vmax.f32 %v359, 1e-30
      %v390 = vmax.f32 %v361, 1e-30
      %v391 = vmax.f32 %v363, 1e-30
      %v392 = vmax.f32 %v365, 1e-30
      %v393 = vmax.f32 %v367, 1e-30
      %v394 = vmax.f32 %v369, 1e-30
      %v395 = vmax.f32 %v371, 1e-30
      %v396 = vmax.f32 %v373, 1e-30
      %v397 = vmax.f32 %v375, 1e-30
      %v398 = vmax.f32 %v377, 1e-30
      %v399 = vmax.f32 %v379, 1e-30
      %v400 = vmax.f32 %v381, 1e-30
      %v401 = vmax.f32 %v383, 1e-30
      %v402 = vmax.f32 %v385, 1e-30
      %v403 = vmax.f32 %v387, 1e-30
      %v404 = vrcp.pop %v388
      %v405 = vmul.f32 1.0, %v404
      %v406 = vrcp.pop %v389
      %v407 = vmul.f32 1.0, %v406
      %v408 = vrcp.pop %v390
      %v409 = vmul.f32 1.0, %v408
      %v410 = vrcp.pop %v391
      %v411 = vmul.f32 1.0, %v410
      %v412 = vrcp.pop %v392
      %v413 = vmul.f32 1.0, %v412
      %v414 = vrcp.pop %v393
      %v415 = vmul.f32 1.0, %v414
      %v416 = vrcp.pop %v394
      %v417 = vmul.f32 1.0, %v416
      %v418 = vrcp.pop %v395
      %v419 = vmul.f32 1.0, %v418
      %v420 = vrcp.pop %v396
      %v421 = vmul.f32 1.0, %v420
      %v422 = vrcp.pop %v397
      %v423 = vmul.f32 1.0, %v422
      %v424 = vrcp.pop %v398
      %v425 = vmul.f32 1.0, %v424
      %v426 = vrcp.pop %v399
      %v427 = vmul.f32 1.0, %v426
      %v428 = vrcp.pop %v400
      %v429 = vmul.f32 1.0, %v428
      %v430 = vrcp.pop %v401
      %v431 = vmul.f32 1.0, %v430
      %v432 = vrcp.pop %v402
      %v433 = vmul.f32 1.0, %v432
      %v434 = vrcp.pop %v403
      %v435 = vmul.f32 1.0, %v434
      %v452 = vlaneseq
      %v453 = vand.u32 %v452, 127
      %v454 = vlaneseq
      %v455 = vshrl.u32 %v454, 7
      %v456 = vsub.s32 %v453, %v455
      %v457 = vrot.slane %v405, %v456
      %v458 = vadd.s32 %v453, 4294967288
      %v459 = vlaneseq
      %v460 = vshrl.u32 %v459, 7
      %v461 = vsub.s32 %v458, %v460
      %v462 = vrot.slane %v407, %v461
      %vm463 = vcmask 130112
      %v464 = vsel %vm463, %v462, %v457
      %v465 = vadd.s32 %v453, 4294967280
      %v466 = vlaneseq
      %v467 = vshrl.u32 %v466, 7
      %v468 = vsub.s32 %v465, %v467
      %v469 = vrot.slane %v409, %v468
      %vm470 = vcmask 195712
      %v471 = vsel %vm470, %v469, %v464
      %v472 = vadd.s32 %v453, 4294967272
      %v473 = vlaneseq
      %v474 = vshrl.u32 %v473, 7
      %v475 = vsub.s32 %v472, %v474
      %v476 = vrot.slane %v411, %v475
      %vm477 = vcmask 261312
      %v478 = vsel %vm477, %v476, %v471
      %v479 = vadd.s32 %v453, 4294967264
      %v480 = vlaneseq
      %v481 = vshrl.u32 %v480, 7
      %v482 = vsub.s32 %v479, %v481
      %v483 = vrot.slane %v413, %v482
      %vm484 = vcmask 326912
      %v485 = vsel %vm484, %v483, %v478
      %v486 = vadd.s32 %v453, 4294967256
      %v487 = vlaneseq
      %v488 = vshrl.u32 %v487, 7
      %v489 = vsub.s32 %v486, %v488
      %v490 = vrot.slane %v415, %v489
      %vm491 = vcmask 392512
      %v492 = vsel %vm491, %v490, %v485
      %v493 = vadd.s32 %v453, 4294967248
      %v494 = vlaneseq
      %v495 = vshrl.u32 %v494, 7
      %v496 = vsub.s32 %v493, %v495
      %v497 = vrot.slane %v417, %v496
      %vm498 = vcmask 458112
      %v499 = vsel %vm498, %v497, %v492
      %v500 = vadd.s32 %v453, 4294967240
      %v501 = vlaneseq
      %v502 = vshrl.u32 %v501, 7
      %v503 = vsub.s32 %v500, %v502
      %v504 = vrot.slane %v419, %v503
      %vm505 = vcmask 523712
      %v506 = vsel %vm505, %v504, %v499
      %v507 = vadd.s32 %v453, 4294967232
      %v508 = vlaneseq
      %v509 = vshrl.u32 %v508, 7
      %v510 = vsub.s32 %v507, %v509
      %v511 = vrot.slane %v421, %v510
      %vm512 = vcmask 589312
      %v513 = vsel %vm512, %v511, %v506
      %v514 = vadd.s32 %v453, 4294967224
      %v515 = vlaneseq
      %v516 = vshrl.u32 %v515, 7
      %v517 = vsub.s32 %v514, %v516
      %v518 = vrot.slane %v423, %v517
      %vm519 = vcmask 654912
      %v520 = vsel %vm519, %v518, %v513
      %v521 = vadd.s32 %v453, 4294967216
      %v522 = vlaneseq
      %v523 = vshrl.u32 %v522, 7
      %v524 = vsub.s32 %v521, %v523
      %v525 = vrot.slane %v425, %v524
      %vm526 = vcmask 720512
      %v527 = vsel %vm526, %v525, %v520
      %v528 = vadd.s32 %v453, 4294967208
      %v529 = vlaneseq
      %v530 = vshrl.u32 %v529, 7
      %v531 = vsub.s32 %v528, %v530
      %v532 = vrot.slane %v427, %v531
      %vm533 = vcmask 786112
      %v534 = vsel %vm533, %v532, %v527
      %v535 = vadd.s32 %v453, 4294967200
      %v536 = vlaneseq
      %v537 = vshrl.u32 %v536, 7
      %v538 = vsub.s32 %v535, %v537
      %v539 = vrot.slane %v429, %v538
      %vm540 = vcmask 851712
      %v541 = vsel %vm540, %v539, %v534
      %v542 = vadd.s32 %v453, 4294967192
      %v543 = vlaneseq
      %v544 = vshrl.u32 %v543, 7
      %v545 = vsub.s32 %v542, %v544
      %v546 = vrot.slane %v431, %v545
      %vm547 = vcmask 917312
      %v548 = vsel %vm547, %v546, %v541
      %v549 = vadd.s32 %v453, 4294967184
      %v550 = vlaneseq
      %v551 = vshrl.u32 %v550, 7
      %v552 = vsub.s32 %v549, %v551
      %v553 = vrot.slane %v433, %v552
      %vm554 = vcmask 982912
      %v555 = vsel %vm554, %v553, %v548
      %v556 = vadd.s32 %v453, 4294967176
      %v557 = vlaneseq
      %v558 = vshrl.u32 %v557, 7
      %v559 = vsub.s32 %v556, %v558
      %v560 = vrot.slane %v435, %v559
      %vm561 = vcmask 1048512
      %v562 = vsel %vm561, %v560, %v555
      %vm563 = vcmask 1042434
      %v564 = vsel %vm563, %v562, %v562
      %vm565 = vcmask 1043459
      %v566 = vsel %vm565, %v562, %v564
      %vm567 = vcmask 1044484
      %v568 = vsel %vm567, %v562, %v566
      %vm569 = vcmask 1045509
      %v570 = vsel %vm569, %v562, %v568
      %vm571 = vcmask 1046534
      %v572 = vsel %vm571, %v562, %v570
      %vm573 = vcmask 1047559
      %v574 = vsel %vm573, %v562, %v572
      %v576 = vmul.f32 %v340, %v574
      %v577 = vmul.f32 %v341, %v574
      %v578 = vmul.f32 %v342, %v574
      %v579 = vmul.f32 %v343, %v574
      %v580 = vmul.f32 %v344, %v574
      %v581 = vmul.f32 %v345, %v574
      %v582 = vmul.f32 %v346, %v574
      %v583 = vmul.f32 %v347, %v574
      %v584 = vmul.f32 %v348, %v574
      %v585 = vmul.f32 %v349, %v574
      %v586 = vmul.f32 %v350, %v574
      %v587 = vmul.f32 %v351, %v574
      %v588 = vmul.f32 %v352, %v574
      %v589 = vmul.f32 %v353, %v574
      %v590 = vmul.f32 %v354, %v574
      %v591 = vmul.f32 %v355, %v574
      %v592 = vlaneseq
      %v593 = vshrl.u32 %v592, 7
      %v594 = vadd.s32 %v593, 8
      %v595 = vadd.s32 %v593, 16
      %v596 = vadd.s32 %v593, 24
      %v597 = vadd.s32 %v593, 32
      %v598 = vadd.s32 %v593, 40
      %v599 = vadd.s32 %v593, 48
      %v600 = vadd.s32 %v593, 56
      %v601 = vadd.s32 %v593, 64
      %v602 = vadd.s32 %v593, 72
      %v603 = vadd.s32 %v593, 80
      %v604 = vadd.s32 %v593, 88
      %v605 = vadd.s32 %v593, 96
      %v606 = vadd.s32 %v593, 104
      %v607 = vadd.s32 %v593, 112
      %v608 = vadd.s32 %v593, 120
      %vm609 = vcmp.eq.s32.totalorder %v593, %v453
      %vm610 = vcmp.eq.s32.totalorder %v594, %v453
      %vm611 = vcmp.eq.s32.totalorder %v595, %v453
      %vm612 = vcmp.eq.s32.totalorder %v596, %v453
      %vm613 = vcmp.eq.s32.totalorder %v597, %v453
      %vm614 = vcmp.eq.s32.totalorder %v598, %v453
      %vm615 = vcmp.eq.s32.totalorder %v599, %v453
      %vm616 = vcmp.eq.s32.totalorder %v600, %v453
      %vm617 = vcmp.eq.s32.totalorder %v601, %v453
      %vm618 = vcmp.eq.s32.totalorder %v602, %v453
      %vm619 = vcmp.eq.s32.totalorder %v603, %v453
      %vm620 = vcmp.eq.s32.totalorder %v604, %v453
      %vm621 = vcmp.eq.s32.totalorder %v605, %v453
      %vm622 = vcmp.eq.s32.totalorder %v606, %v453
      %vm623 = vcmp.eq.s32.totalorder %v607, %v453
      %vm624 = vcmp.eq.s32.totalorder %v608, %v453
      %v625 = vsel %vm609, %v576, 0.0
      %v626 = vsel %vm610, %v577, 0.0
      %v627 = vsel %vm611, %v578, 0.0
      %v628 = vsel %vm612, %v579, 0.0
      %v629 = vsel %vm613, %v580, 0.0
      %v630 = vsel %vm614, %v581, 0.0
      %v631 = vsel %vm615, %v582, 0.0
      %v632 = vsel %vm616, %v583, 0.0
      %v633 = vsel %vm617, %v584, 0.0
      %v634 = vsel %vm618, %v585, 0.0
      %v635 = vsel %vm619, %v586, 0.0
      %v636 = vsel %vm620, %v587, 0.0
      %v637 = vsel %vm621, %v588, 0.0
      %v638 = vsel %vm622, %v589, 0.0
      %v639 = vsel %vm623, %v590, 0.0
      %v640 = vsel %vm624, %v591, 0.0
      %v641 = vadd.f32 %v625, %v626
      %v642 = vadd.f32 %v641, %v627
      %v643 = vadd.f32 %v642, %v628
      %v644 = vadd.f32 %v643, %v629
      %v645 = vadd.f32 %v644, %v630
      %v646 = vadd.f32 %v645, %v631
      %v647 = vadd.f32 %v646, %v632
      %v648 = vadd.f32 %v647, %v633
      %v649 = vadd.f32 %v648, %v634
      %v650 = vadd.f32 %v649, %v635
      %v651 = vadd.f32 %v650, %v636
      %v652 = vadd.f32 %v651, %v637
      %v653 = vadd.f32 %v652, %v638
      %v654 = vadd.f32 %v653, %v639
      %v655 = vadd.f32 %v654, %v640
      %656 = vadd.xlane.f32.xlu0 %v655
      %v657 = vpop.xlane.xlu0 %656
      %v658 = vrot.slane %v657, 4
      %v659 = vadd.f32 %v657, %v658
      %v660 = vrot.slane %v659, 2
      %v661 = vadd.f32 %v659, %v660
      %v662 = vrot.slane %v661, 1
      %v663 = vadd.f32 %v661, %v662
      %s664 = vtos %v663
      %v665 = vadd.f32 %v576, %v577
      %v666 = vadd.f32 %v665, %v578
      %v667 = vadd.f32 %v666, %v579
      %v668 = vadd.f32 %v667, %v580
      %v669 = vadd.f32 %v668, %v581
      %v670 = vadd.f32 %v669, %v582
      %v671 = vadd.f32 %v670, %v583
      %v672 = vadd.f32 %v671, %v584
      %v673 = vadd.f32 %v672, %v585
      %v674 = vadd.f32 %v673, %v586
      %v675 = vadd.f32 %v674, %v587
      %v676 = vadd.f32 %v675, %v588
      %v677 = vadd.f32 %v676, %v589
      %v678 = vadd.f32 %v677, %v590
      %v679 = vadd.f32 %v678, %v591
      %680 = vadd.xlane.f32.xlu0 %v679
      %v681 = vpop.xlane.xlu0 %680
      %v682 = vrot.slane %v681, 4
      %v683 = vadd.f32 %v681, %v682
      %v684 = vrot.slane %v683, 2
      %v685 = vadd.f32 %v683, %v684
      %v686 = vrot.slane %v685, 1
      %v687 = vadd.f32 %v685, %v686
      %s688 = vtos %v687
      %s689 = ssub.f32 %s688, %s664
      %s690 = smul.f32 %s689, 0.0625
      %s691 = scalar_lea.smem [#allocation6], 0
      %692 = sst [smem:[%s691]] %s690
    $region17: #{tpu_custom_call.1} parent=1 // pred_fallthru
      _
    // Predicated region
    $region18: #{tpu_custom_call.1} parent=1 // pred_check
      _
    $region19: #{tpu_custom_call.1} parent=1 // pred_check_branch
      %694 = sbr.rel (0) target = $region21
    $region20: #{tpu_custom_call.1} parent=1 // pred_region
      %s696 = ssub.s32 16, 16
      %697 = vsyncadd [#allocation5], %s696
      %700 = dma.smem_to_hbm [#allocation6], 16, %s1, [#allocation5]
    $region21: #{tpu_custom_call.1} parent=1 // pred_fallthru
      _
    // Predicated region
    $region22: #{tpu_custom_call.1} parent=1 // pred_check
      _
    $region23: #{tpu_custom_call.1} parent=1 // pred_check_branch
      %702 = sbr.rel (0) target = $region25
    $region24: #{tpu_custom_call.1} parent=1 // pred_region
      %703 = dma.done [#allocation5], 16
    $region25: #{tpu_custom_call.1} parent=1 // pred_fallthru
      _
    %704 = sfence
    %705 = vsyncpa [#allocation4], 1
    %706 = vsyncpa [#allocation5], 1

</llo_original>
